<compile_context>
chip_gen: v7x
topology: tpu7x:2x2x1
jax: 0.10.0
libtpu: 0.0.40
codegen_flags: <defaults>
</compile_context>

<pallas_src>
import jax
import jax.numpy as jnp
from jax.experimental import pallas as pl
from jax.experimental.pallas import tpu as pltpu


def _pick_tile(dim, pref, align):
    """Largest tile <= pref that is a multiple of `align` and divides `dim`.

    Falls back to the full dim (a block shape equal to the array dim is
    always legal, even when not (8,128)-aligned), which is exactly what we
    want at toy sizes: a single grid step and no padding anywhere.
    """
    if dim <= pref:
        return dim
    t = (pref // align) * align
    while t >= align:
        if dim % t == 0:
            return t
        t -= align
    return dim


def linear_relu_kernel(x_ref, w_ref, b_ref, o_ref, acc_ref):
    """One (i, j, k) grid step of  o = relu(x @ w + b)  with f32 accumulation."""
    k = pl.program_id(2)

    @pl.when(k == 0)
    def _():
        acc_ref[...] = jnp.zeros_like(acc_ref)

    acc_ref[...] += jnp.dot(x_ref[...], w_ref[...],
                            preferred_element_type=jnp.float32)

    @pl.when(k == pl.num_programs(2) - 1)
    def _():
        out = acc_ref[...] + b_ref[...]          # (1, tn) broadcasts over rows
        o_ref[...] = jnp.maximum(out, 0.0).astype(o_ref.dtype)


def linear_relu(x, w_t, b_row):
    """x: [M, K]; w_t: [K, N] (pre-transposed); b_row: [1, N]  ->  [M, N]."""
    M, K = x.shape
    K2, N = w_t.shape
    assert K == K2 and b_row.shape == (1, N)

    # Tile sizes: full dims at toy size (grid == (1,1,1), single fused step);
    # 128-aligned tiles capped at 512 (f32) for v7x's 64 MiB VMEM otherwise.
    tm = _pick_tile(M, 256, 8)
    tn = _pick_tile(N, 512, 128)
    tk = _pick_tile(K, 512, 128)
    grid = (M // tm, N // tn, K // tk)

    bytes_accessed = 4 * (M * K + K * N + N + M * N)
    return pl.pallas_call(
        linear_relu_kernel,
        out_shape=jax.ShapeDtypeStruct((M, N), x.dtype),
        grid=grid,
        in_specs=[
            pl.BlockSpec((tm, tk), lambda i, j, k: (i, k)),
            pl.BlockSpec((tk, tn), lambda i, j, k: (k, j)),
            pl.BlockSpec((1, tn), lambda i, j, k: (0, j)),
        ],
        out_specs=pl.BlockSpec((tm, tn), lambda i, j, k: (i, j)),
        scratch_shapes=[pltpu.VMEM((tm, tn), jnp.float32)],
        compiler_params=pltpu.CompilerParams(
            dimension_semantics=("parallel", "parallel", "arbitrary")),
        cost_estimate=pl.CostEstimate(
            flops=2 * M * K * N,
            transcendentals=0,
            bytes_accessed=bytes_accessed),
    )(x, w_t, b_row)


def init_text_encoder_params(key, input_size, hidden_size, dtype=jnp.float32):
    """Mimics nn.Linear init: uniform(-1/sqrt(in), 1/sqrt(in)).

    Weight is stored pre-transposed as [in, out] and bias as [1, out]; no
    padding is stored, so the forward needs no runtime pad / slice HBM copies.
    """
    kw, kb = jax.random.split(key)
    bound = 1.0 / (input_size ** 0.5)
    # torch weight shape is (out, in); we store its transpose (in, out).
    w_t = jax.random.uniform(kw, (input_size, hidden_size), dtype,
                             minval=-bound, maxval=bound)
    b_row = jax.random.uniform(kb, (1, hidden_size), dtype,
                               minval=-bound, maxval=bound)
    # TODO(synk): at non-toy sizes, cast x/w_t to bf16 (keep
    # preferred_element_type=jnp.float32) and pad in/out dims to 256 at init
    # time for full 2x256^2 MXU tiles on v6e/v7x (fp8, not int8, on v7x).
    return {"w_t": w_t, "b_row": b_row}


@jax.jit
def text_encoder_forward(params, x):
    """Matches TextEncoder.forward: relu(fc1(x)).  Zero wrapper HBM copies."""
    return linear_relu(x, params["w_t"], params["b_row"])


if __name__ == "__main__":
    # Small shapes consistent with the module.
    input_size = 32
    hidden_size = 32
    batch = 8

    root = jax.random.PRNGKey(0)
    k_par, k_x = jax.random.split(root)

    params = init_text_encoder_params(k_par, input_size, hidden_size)
    x = jax.random.normal(k_x, (batch, input_size), jnp.float32)

    y = text_encoder_forward(params, x)
    jax.block_until_ready(y)

    # Pure-JAX reference check.
    ref = jnp.maximum(x @ params["w_t"] + params["b_row"][0], 0.0)
    assert y.shape == (batch, hidden_size), "wrong output shape"
    assert jnp.allclose(y, ref, atol=1e-5), "text encoder mismatch"

    print("KERNEL_OK")
</pallas_src>

<mosaic_0001>
module attributes {stable_mosaic.version = 11 : i64} {
  func.func @linear_relu_kernel(%arg0: i32, %arg1: i32, %arg2: i32, %arg3: memref<8x32xf32, #tpu.memory_space<vmem>>, %arg4: memref<32x32xf32, #tpu.memory_space<vmem>>, %arg5: memref<1x32xf32, #tpu.memory_space<vmem>>, %arg6: memref<8x32xf32, #tpu.memory_space<vmem>>, %arg7: memref<8x32xf32, #tpu.memory_space<vmem>>) attributes {dimension_semantics = [#tpu.dimension_semantics<parallel>, #tpu.dimension_semantics<parallel>, #tpu.dimension_semantics<arbitrary>], iteration_bounds = array<i64: 1, 1, 1>, scalar_prefetch = 0 : i64, scratch_operands = 1 : i64, tpu.core_type = #tpu.core_type<tc>, window_params = [{transform_indices = @transform_0, window_bounds = array<i64: 8, 32>}, {transform_indices = @transform_1, window_bounds = array<i64: 32, 32>}, {transform_indices = @transform_2, window_bounds = array<i64: 1, 32>}, {transform_indices = @transform_3, window_bounds = array<i64: 8, 32>}]} {
    %c0_i32 = arith.constant 0 : i32
    %0 = arith.cmpi eq, %arg2, %c0_i32 : i32
    %1 = arith.extui %0 : i1 to i32
    %c0_i32_0 = arith.constant 0 : i32
    %2 = arith.cmpi ne, %1, %c0_i32_0 : i32
    scf.if %2 {
      %cst_10 = arith.constant 0.000000e+00 : f32
      %12 = vector.broadcast %cst_10 : f32 to vector<8x32xf32>
      %c0_11 = arith.constant 0 : index
      %c0_12 = arith.constant 0 : index
      %13 = vector.load %arg7[%c0_11, %c0_12] : memref<8x32xf32, #tpu.memory_space<vmem>>, vector<8x32xf32>
      tpu.vector_store %arg7[%c0_11, %c0_12], %12 {strides = array<i32>} : memref<8x32xf32, #tpu.memory_space<vmem>>, vector<8x32xf32>,
    } else {
    }
    %c0 = arith.constant 0 : index
    %c0_1 = arith.constant 0 : index
    %3 = vector.load %arg7[%c0, %c0_1] : memref<8x32xf32, #tpu.memory_space<vmem>>, vector<8x32xf32>
    %c0_2 = arith.constant 0 : index
    %c0_3 = arith.constant 0 : index
    %4 = vector.load %arg3[%c0_2, %c0_3] : memref<8x32xf32, #tpu.memory_space<vmem>>, vector<8x32xf32>
    %c0_4 = arith.constant 0 : index
    %c0_5 = arith.constant 0 : index
    %5 = vector.load %arg4[%c0_4, %c0_5] : memref<32x32xf32, #tpu.memory_space<vmem>>, vector<32x32xf32>
    %cst = arith.constant dense<0.000000e+00> : vector<8x32xf32>
    %6 = tpu.matmul %4, %5, %cst {dimension_numbers = #tpu.dot_dimension_numbers<[1], [0], [0], [1], [0, 0, 1, 1], [], []>} : vector<8x32xf32>, vector<32x32xf32>, vector<8x32xf32> -> vector<8x32xf32>
    %7 = arith.addf %3, %6 : vector<8x32xf32>
    %c0_6 = arith.constant 0 : index
    %c0_7 = arith.constant 0 : index
    %8 = vector.load %arg7[%c0_6, %c0_7] : memref<8x32xf32, #tpu.memory_space<vmem>>, vector<8x32xf32>
    tpu.vector_store %arg7[%c0_6, %c0_7], %7 {strides = array<i32>} : memref<8x32xf32, #tpu.memory_space<vmem>>, vector<8x32xf32>,
    %c0_i32_8 = arith.constant 0 : i32
    %9 = arith.cmpi eq, %arg2, %c0_i32_8 : i32
    %10 = arith.extui %9 : i1 to i32
    %c0_i32_9 = arith.constant 0 : i32
    %11 = arith.cmpi ne, %10, %c0_i32_9 : i32
    scf.if %11 {
      %c0_10 = arith.constant 0 : index
      %c0_11 = arith.constant 0 : index
      %12 = vector.load %arg7[%c0_10, %c0_11] : memref<8x32xf32, #tpu.memory_space<vmem>>, vector<8x32xf32>
      %c0_12 = arith.constant 0 : index
      %c0_13 = arith.constant 0 : index
      %13 = vector.load %arg5[%c0_12, %c0_13] : memref<1x32xf32, #tpu.memory_space<vmem>>, vector<1x32xf32>
      %14 = vector.broadcast %13 : vector<1x32xf32> to vector<8x32xf32>
      %15 = arith.addf %12, %14 : vector<8x32xf32>
      %cst_14 = arith.constant 0.000000e+00 : f32
      %16 = vector.broadcast %cst_14 : f32 to vector<8x32xf32>
      %17 = arith.maximumf %15, %16 : vector<8x32xf32>
      %c0_15 = arith.constant 0 : index
      %c0_16 = arith.constant 0 : index
      %18 = vector.load %arg6[%c0_15, %c0_16] : memref<8x32xf32, #tpu.memory_space<vmem>>, vector<8x32xf32>
      tpu.vector_store %arg6[%c0_15, %c0_16], %17 {strides = array<i32>} : memref<8x32xf32, #tpu.memory_space<vmem>>, vector<8x32xf32>,
    } else {
    }
    return
  }
  func.func @transform_0(%arg0: i32, %arg1: i32, %arg2: i32) -> (i32, i32) {
    %c0_i32 = arith.constant 0 : i32
    return %arg0, %arg2 : i32, i32
  }
  func.func @transform_1(%arg0: i32, %arg1: i32, %arg2: i32) -> (i32, i32) {
    %c0_i32 = arith.constant 0 : i32
    return %arg2, %arg1 : i32, i32
  }
  func.func @transform_2(%arg0: i32, %arg1: i32, %arg2: i32) -> (i32, i32) {
    %c0_i32 = arith.constant 0 : i32
    %c0_i32_0 = arith.constant 0 : i32
    return %c0_i32, %arg1 : i32, i32
  }
  func.func @transform_3(%arg0: i32, %arg1: i32, %arg2: i32) -> (i32, i32) {
    %c0_i32 = arith.constant 0 : i32
    return %arg0, %arg1 : i32, i32
  }
}

</mosaic_0001>

<llo_original>
// kernel: text_encoder_forward.1
$region0: #{text_encoder_forward.1}
  #allocation0 [shape = 'u32[]', space=smem, size = 0x4, offset = 0x4, fixed_abs, tag = 'smem constant byte address 0x4 - core index']
  #allocation1 [shape = 'u32[144,128]{1,0:T(1,128)}', space=vmem, size = 0x12000, scoped, tag = 'internal scratch']
  #allocation2 [shape = 'f32[8,32]{1,0:T(8,128)}', space=vmem, size = 0x1000, scoped, tag = 'scratch operand']
  %s0 = inlined_call_operand.hbm [shape: f32[8,32], index: 0, kind: input, shape index: {}]
  %s1 = inlined_call_operand.hbm [shape: f32[32,32], index: 1, kind: input, shape index: {}]
  %s2 = inlined_call_operand.hbm [shape: f32[1,32], index: 2, kind: input, shape index: {}]
  %s3 = inlined_call_operand.hbm [shape: f32[8,32], index: 3, kind: output, shape index: {}]
  %s4 = sld [smem:[#allocation0]]
  $region42: #{text_encoder_forward.1} parent=0
    _
  %s6 = ssub.s32 1, %s4
  %s7 = scalar_select 0, %s6, %s4
  $region1: #{text_encoder_forward.1} parent=0
    #allocation3 [shape = 'u8[4096]{0}', space=vmem, size = 0x1000, scoped, tag = 'input window, operand 0, single buffered']
    #allocation4 [shape = 's32[1]{0}', space=sflag, size = 0x4, scoped, tag = 'scoped memory for text_encoder_forward.1']
    #allocation5 [shape = 's32[1]{0}', space=sflag, size = 0x4, scoped, tag = 'scoped memory for text_encoder_forward.1']
    #allocation6 [shape = 'u8[16384]{0}', space=vmem, size = 0x4000, scoped, tag = 'input window, operand 1, single buffered']
    #allocation7 [shape = 's32[1]{0}', space=sflag, size = 0x4, scoped, tag = 'scoped memory for text_encoder_forward.1']
    #allocation8 [shape = 'u8[512]{0}', space=vmem, size = 0x400, scoped, tag = 'input window, operand 2, single buffered']
    #allocation9 [shape = 'u8[4096]{0}', space=vmem, size = 0x1000, scoped, tag = 'output window, operand 0, single buffered']
    %8 = vsyncpa [#allocation4], 0
    %9 = vsyncpa [#allocation7], 0
    %10 = vsyncpa [#allocation5], 0
    // Predicated region
    $region2: #{text_encoder_forward.1} parent=1 // pred_check
      _
    $region3: #{text_encoder_forward.1} parent=1 // pred_check_branch
      %12 = sbr.rel (0) target = $region5
    $region4: #{text_encoder_forward.1} parent=1 // pred_region
      %s14 = ssub.s32 128, 128
      %15 = vsyncadd [#allocation4], %s14
      %s17 = sshll.u32 [#allocation3], 4
      %s18 = int_to_ptr.vmem [resolvable:$true] %s17
      %20 = dma.hbm_to_vmem [thread:$0]  %s0, 128, %s18, [#allocation4]
    $region5: #{text_encoder_forward.1} parent=1 // pred_fallthru
      _
    // Predicated region
    $region6: #{text_encoder_forward.1} parent=1 // pred_check
      _
    $region7: #{text_encoder_forward.1} parent=1 // pred_check_branch
      %22 = sbr.rel (0) target = $region9
    $region8: #{text_encoder_forward.1} parent=1 // pred_region
      %s24 = ssub.s32 512, 512
      %25 = vsyncadd [#allocation7], %s24
      %s26 = sshll.u32 [#allocation6], 4
      %s27 = int_to_ptr.vmem [resolvable:$true] %s26
      %32 = dma.hbm_to_vmem [thread:$0]  %s1, 512, %s27, [#allocation7], 128, 128, 8
    $region9: #{text_encoder_forward.1} parent=1 // pred_fallthru
      _
    // Predicated region
    $region10: #{text_encoder_forward.1} parent=1 // pred_check
      _
    $region11: #{text_encoder_forward.1} parent=1 // pred_check_branch
      %34 = sbr.rel (0) target = $region13
    $region12: #{text_encoder_forward.1} parent=1 // pred_region
      %s36 = ssub.s32 16, 16
      %37 = vsyncadd [#allocation7], %s36
      %s39 = sshll.u32 [#allocation8], 4
      %s40 = int_to_ptr.vmem [resolvable:$true] %s39
      %42 = dma.hbm_to_vmem [thread:$0]  %s2, 16, %s40, [#allocation7]
    $region13: #{text_encoder_forward.1} parent=1 // pred_fallthru
      _
    // Predicated region
    $region14: #{text_encoder_forward.1} parent=1 // pred_check
      _
    $region15: #{text_encoder_forward.1} parent=1 // pred_check_branch
      %44 = sbr.rel (0) target = $region17
    $region16: #{text_encoder_forward.1} parent=1 // pred_region
      %45 = dma.done [#allocation4], 128
    $region17: #{text_encoder_forward.1} parent=1 // pred_fallthru
      _
    // Predicated region
    $region18: #{text_encoder_forward.1} parent=1 // pred_check
      _
    $region19: #{text_encoder_forward.1} parent=1 // pred_check_branch
      %47 = sbr.rel (0) target = $region21
    $region20: #{text_encoder_forward.1} parent=1 // pred_region
      %48 = dma.done [#allocation7], 512
    $region21: #{text_encoder_forward.1} parent=1 // pred_fallthru
      _
    // Predicated region
    $region22: #{text_encoder_forward.1} parent=1 // pred_check
      _
    $region23: #{text_encoder_forward.1} parent=1 // pred_check_branch
      %50 = sbr.rel (0) target = $region25
    $region24: #{text_encoder_forward.1} parent=1 // pred_region
      %51 = dma.done [#allocation7], 16
    $region25: #{text_encoder_forward.1} parent=1 // pred_fallthru
      _
    %p52 = scmp.eq.s32.totalorder 0, 0
    // Predicated region
    $region26: #{text_encoder_forward.1} parent=1 // pred_check
      %p53 = pneg %p52
    $region27: #{text_encoder_forward.1} parent=1 // pred_check_branch
      %55 = sbr.rel (%p53) target = $region29
    $region28: #{text_encoder_forward.1} parent=1 // pred_region
      %vm56 = vcmask 261120
      %57 = vst.msk [vmem:[#allocation2] sm:$0xff] %vm56, 0.0
    $region29: #{text_encoder_forward.1} parent=1 // pred_fallthru
      _
    %v58 = vld [vmem:[#allocation2] sm:$0xff]
    %v59 = vld [vmem:[#allocation3] sm:$0xff]
    %v60 = vld [vmem:[#allocation6] sm:$0xff]
    %v61 = vld [vmem:[#allocation6 + $0x8] sm:$0xff]
    %v62 = vld [vmem:[#allocation6 + $0x10] sm:$0xff]
    %v63 = vld [vmem:[#allocation6 + $0x18] sm:$0xff]
    %vm64 = vcmask 261120
    %v66 = vsel %vm64, %v59, 0
    %68 = vmatprep.subr.mxu0 0.0
    %69 = vmatpush1.msra.mxu0 %v60
    %70 = vmatprep.subr.mxu0 0.0
    %71 = vmatpush1.msra.mxu0 %v61
    %72 = vmatprep.subr.mxu0 0.0
    %73 = vmatpush1.msra.mxu0 %v62
    %74 = vmatprep.subr.mxu0 0.0
    %75 = vmatpush1.msra.mxu0 %v63
    %76 = vmatprep.subr.mxu0 0.0
    %77 = vmatpush1.msra.mxu0 0.0
    %78 = vmatprep.subr.mxu0 0.0
    %79 = vmatpush1.msra.mxu0 0.0
    %80 = vmatprep.subr.mxu0 0.0
    %81 = vmatpush1.msra.mxu0 0.0
    %82 = vmatprep.subr.mxu0 0.0
    %83 = vmatpush1.msra.mxu0 0.0
    %84 = vmatprep.subr.mxu0 0.0
    %85 = vmatpush1.msra.mxu0 0.0
    %86 = vmatprep.subr.mxu0 0.0
    %87 = vmatpush1.msra.mxu0 0.0
    %88 = vmatprep.subr.mxu0 0.0
    %89 = vmatpush1.msra.mxu0 0.0
    %90 = vmatprep.subr.mxu0 0.0
    %91 = vmatpush1.msra.mxu0 0.0
    %92 = vmatprep.subr.mxu0 0.0
    %93 = vmatpush1.msra.mxu0 0.0
    %94 = vmatprep.subr.mxu0 0.0
    %95 = vmatpush1.msra.mxu0 0.0
    %96 = vmatprep.subr.mxu0 0.0
    %97 = vmatpush1.msra.mxu0 0.0
    %98 = vmatprep.subr.mxu0 0.0
    %99 = vmatpush1.msra.mxu0 0.0
    %100 = vmatprep.subr.mxu0 0.0
    %101 = vmatpush1.msra.mxu0 0.0
    %102 = vmatprep.subr.mxu0 0.0
    %103 = vmatpush1.msra.mxu0 0.0
    %104 = vmatprep.subr.mxu0 0.0
    %105 = vmatpush1.msra.mxu0 0.0
    %106 = vmatprep.subr.mxu0 0.0
    %107 = vmatpush1.msra.mxu0 0.0
    %108 = vmatprep.subr.mxu0 0.0
    %109 = vmatpush1.msra.mxu0 0.0
    %110 = vmatprep.subr.mxu0 0.0
    %111 = vmatpush1.msra.mxu0 0.0
    %112 = vmatprep.subr.mxu0 0.0
    %113 = vmatpush1.msra.mxu0 0.0
    %114 = vmatprep.subr.mxu0 0.0
    %115 = vmatpush1.msra.mxu0 0.0
    %116 = vmatprep.subr.mxu0 0.0
    %117 = vmatpush1.msra.mxu0 0.0
    %118 = vmatprep.subr.mxu0 0.0
    %119 = vmatpush1.msra.mxu0 0.0
    %120 = vmatprep.subr.mxu0 0.0
    %121 = vmatpush1.msra.mxu0 0.0
    %122 = vmatprep.subr.mxu0 0.0
    %123 = vmatpush1.msra.mxu0 0.0
    %124 = vmatprep.subr.mxu0 0.0
    %125 = vmatpush1.msra.mxu0 0.0
    %126 = vmatprep.subr.mxu0 0.0
    %127 = vmatpush1.msra.mxu0 0.0
    %128 = vmatprep.subr.mxu0 0.0
    %129 = vmatpush1.msra.mxu0 0.0
    %130 = vmatprep.subr.mxu0 0.0
    %131 = vmatpush1.msra.mxu0 0.0
    %132 = vmatprep.mubr.f32.mxu0 0.0
    %133 = vmatmul.mubr.f32.gmra.mrb[0].mxu0 %v66
    %v134 = vpop.f32.mrb[0].mxu0
    %v135 = vadd.f32 0.0, %v134
    %v136 = vpop.f32.mrb[0].mxu0
    %137 = vdwg.mxu0
    %v138 = vadd.f32 %v58, %v135
    %139 = vst.msk [vmem:[#allocation2] sm:$0xff] %vm64, %v138
    // Predicated region
    $region30: #{text_encoder_forward.1} parent=1 // pred_check
      %p140 = pneg %p52
    $region31: #{text_encoder_forward.1} parent=1 // pred_check_branch
      %142 = sbr.rel (%p140) target = $region33
    $region32: #{text_encoder_forward.1} parent=1 // pred_region
      %v143 = vld [vmem:[#allocation2] sm:$0xff]
      %v144 = vld [vmem:[#allocation8] sm:$0x1]
      %v146 = vlaneseq
      %v147 = vshrl.u32 %v146, 7
      %v148 = vsub.s32 0, %v147
      %v149 = vrot.slane %v144, %v148
      %v151 = vadd.f32 %v143, %v149
      %v152 = vmax.f32 %v151, 0.0
      %153 = vst.msk [vmem:[#allocation9] sm:$0xff] %vm64, %v152
    $region33: #{text_encoder_forward.1} parent=1 // pred_fallthru
      _
    // Predicated region
    $region34: #{text_encoder_forward.1} parent=1 // pred_check
      _
    $region35: #{text_encoder_forward.1} parent=1 // pred_check_branch
      %155 = sbr.rel (0) target = $region37
    $region36: #{text_encoder_forward.1} parent=1 // pred_region
      %s157 = ssub.s32 128, 128
      %158 = vsyncadd [#allocation5], %s157
      %s160 = sshll.u32 [#allocation9], 4
      %s161 = int_to_ptr.vmem [resolvable:$true] %s160
      %163 = dma.vmem_to_hbm [thread:$0]  %s161, 128, %s3, [#allocation5]
    $region37: #{text_encoder_forward.1} parent=1 // pred_fallthru
      _
    // Predicated region
    $region38: #{text_encoder_forward.1} parent=1 // pred_check
      _
    $region39: #{text_encoder_forward.1} parent=1 // pred_check_branch
      %165 = sbr.rel (0) target = $region41
    $region40: #{text_encoder_forward.1} parent=1 // pred_region
      %166 = dma.done [#allocation5], 128
    $region41: #{text_encoder_forward.1} parent=1 // pred_fallthru
      _
    %167 = vsyncpa [#allocation4], 1
    %168 = vsyncpa [#allocation7], 1
    %169 = vsyncpa [#allocation5], 1

</llo_original>
